<compile_context>
chip_gen: v7x
topology: tpu7x:2x2x1
jax: 0.10.0
libtpu: 0.0.40
codegen_flags: <defaults>
</compile_context>

<pallas_src>
import math
import functools

import jax
import jax.numpy as jnp
from jax.experimental import pallas as pl
from jax.experimental.pallas import tpu as pltpu


def _round_up(x, m):
    return (x + m - 1) // m * m


def _laplace_filter(a_, b_, ks):
    """Laplace wavelet filter bank, identical to the module's forward()."""
    c = a_.shape[0]
    t = jnp.linspace(0.0, 1.0, ks, dtype=jnp.float32)[None, :]        # (1, ks)
    p = t - b_.reshape(c, 1) / a_.reshape(c, 1)                       # (C, ks)
    A, ep, tal, f = 0.08, 0.03, 0.1, 50.0
    w = 2.0 * math.pi * f
    arg = w * (p - tal)
    return (A * jnp.exp((-ep / math.sqrt(1.0 - ep * ep)) * arg)
            * (-jnp.sin(arg))).astype(jnp.float32)                    # (C, ks)


def _laplace_conv_kernel(filt_ref, x_ref, out_ref, xp_ref, patch_ref,
                         *, ks, left, b_tile, length, l_pad):
    lp = l_pad + ks - 1

    # 'same' padding folded into the kernel: zero only the pad columns (the
    # real-data columns are fully overwritten right below), then drop the
    # samples into columns [left, left + length).
    if left > 0:
        xp_ref[:, :left] = jnp.zeros((b_tile, left), jnp.float32)
    tail = lp - (left + length)
    if tail > 0:
        xp_ref[:, left + length:] = jnp.zeros((b_tile, tail), jnp.float32)
    xp_ref[:, left:left + length] = x_ref[...]

    filt = filt_ref[...]                                              # (C, ks)

    # Static unroll over the batch tile: per element, write the ks shifted rows
    # straight into the im2col VMEM scratch, then one MXU matmul whose
    # (C, l_pad) result is a lane-dense store (l_pad is a multiple of 128).
    for b in range(b_tile):
        row = xp_ref[b:b + 1, :]                                      # (1, lp)
        for k in range(ks):
            patch_ref[k:k + 1, :] = row[:, k:k + l_pad]
        out_ref[b] = jnp.dot(filt, patch_ref[...],
                             preferred_element_type=jnp.float32
                             ).astype(out_ref.dtype)


def laplace_fast_forward(waveforms, a_, b_, kernel_size, *, b_tile=None):
    """Pallas equivalent of Laplace_fast(out_channels, kernel_size).forward."""
    # Replicate the module's kernel-size adjustment.
    ks = kernel_size - 1
    if kernel_size % 2 == 0:
        ks += 1

    n, c_in, length = waveforms.shape
    assert c_in == 1, "Laplace_fast only supports in_channels == 1"
    out_channels = a_.shape[0]

    # F.conv1d(padding='same'): left = (ks-1)//2, the extra pad goes right.
    left = (ks - 1) // 2

    # Lane-dense output: pad the stored conv length up to a multiple of 128.
    l_pad = _round_up(length, 128)
    lp = l_pad + ks - 1           # padded-signal length held in VMEM scratch

    # Batch tiling: B_TILE elements per grid step (sublane-friendly).
    if b_tile is None:
        b_tile = 8 if n >= 8 else n
    n_pad = _round_up(n, b_tile)

    x2 = waveforms[:, 0, :].astype(jnp.float32)                       # (N, L)
    if n_pad != n:
        x2 = jnp.pad(x2, ((0, n_pad - n), (0, 0)))

    filt = _laplace_filter(a_.astype(jnp.float32),
                           b_.astype(jnp.float32), ks)                # (C, ks)

    kernel = functools.partial(_laplace_conv_kernel, ks=ks, left=left,
                               b_tile=b_tile, length=length, l_pad=l_pad)

    cost = pl.CostEstimate(
        flops=int(2 * n_pad * out_channels * ks * l_pad),
        transcendentals=0,
        bytes_accessed=int(4 * (n_pad * length + out_channels * ks
                                + n_pad * out_channels * l_pad)))

    out = pl.pallas_call(
        kernel,
        out_shape=jax.ShapeDtypeStruct((n_pad, out_channels, l_pad),
                                       jnp.float32),
        grid_spec=pltpu.PrefetchScalarGridSpec(
            num_scalar_prefetch=0,
            grid=(n_pad // b_tile,),
            in_specs=[
                pl.BlockSpec((out_channels, ks), lambda i: (0, 0)),   # filter
                pl.BlockSpec((b_tile, length), lambda i: (i, 0)),     # signal
            ],
            out_specs=pl.BlockSpec((b_tile, out_channels, l_pad),
                                   lambda i: (i, 0, 0)),
            scratch_shapes=[
                pltpu.VMEM((b_tile, lp), jnp.float32),     # padded signal
                pltpu.VMEM((ks, l_pad), jnp.float32),      # im2col patches
            ]),
        compiler_params=pltpu.CompilerParams(
            dimension_semantics=("parallel",)),   # batch tiles are independent
        cost_estimate=cost,
    )(filt, x2)

    # Strip batch / length padding (no-op when already aligned).
    if n_pad != n or l_pad != length:
        out = out[:n, :, :length]
    return out


def _reference(waveforms, a_, b_, kernel_size):
    """Pure-JAX reference of the PyTorch forward (sanity check)."""
    ks = kernel_size - 1
    if kernel_size % 2 == 0:
        ks += 1
    _, _, length = waveforms.shape
    filt = _laplace_filter(a_.astype(jnp.float32), b_.astype(jnp.float32), ks)
    left = (ks - 1) // 2
    right = (ks - 1) - left
    xpad = jnp.pad(waveforms[:, 0, :].astype(jnp.float32),
                   ((0, 0), (left, right)))
    patches = jnp.stack([xpad[:, k:k + length] for k in range(ks)], axis=1)
    return jnp.einsum('ck,nkl->ncl', filt, patches)


if __name__ == "__main__":
    key = jax.random.PRNGKey(0)
    batch, length = 2, 64
    out_channels, kernel_size = 8, 16   # module adjusts ks -> 16 (even input)

    waveforms = jax.random.normal(key, (batch, 1, length), dtype=jnp.float32)
    # Deterministic parameter init, identical to the module's __init__.
    a_ = jnp.linspace(1.0, 10.0, out_channels, dtype=jnp.float32)
    b_ = jnp.linspace(0.0, 10.0, out_channels, dtype=jnp.float32)

    out = laplace_fast_forward(waveforms, a_, b_, kernel_size)
    out = jax.block_until_ready(out)

    ref = _reference(waveforms, a_, b_, kernel_size)
    assert out.shape == (batch, out_channels, length), out.shape
    rel_err = jnp.max(jnp.abs(out - ref)) / (jnp.max(jnp.abs(ref)) + 1e-9)
    assert float(rel_err) < 1e-2, float(rel_err)
    print("KERNEL_OK")
</pallas_src>

<mosaic_0001>
module attributes {stable_mosaic.version = 11 : i64} {
  func.func @_laplace_conv_kernel(%arg0: i32, %arg1: memref<8x16xf32, #tpu.memory_space<vmem>>, %arg2: memref<2x64xf32, #tpu.memory_space<vmem>>, %arg3: memref<2x8x128xf32, #tpu.memory_space<vmem>>, %arg4: memref<2x143xf32, #tpu.memory_space<vmem>>, %arg5: memref<16x128xf32, #tpu.memory_space<vmem>>) attributes {dimension_semantics = [#tpu.dimension_semantics<parallel>], iteration_bounds = array<i64: 1>, scalar_prefetch = 0 : i64, scratch_operands = 2 : i64, tpu.core_type = #tpu.core_type<tc>, window_params = [{pipeline_mode = #tpu.pipeline_mode<synchronous>, transform_indices = @transform_0, window_bounds = array<i64: 8, 16>}, {transform_indices = @transform_1, window_bounds = array<i64: 2, 64>}, {transform_indices = @transform_2, window_bounds = array<i64: 2, 8, 128>}]} {
    %cst = arith.constant 0.000000e+00 : f32
    %0 = vector.broadcast %cst : f32 to vector<2x7xf32>
    %c0 = arith.constant 0 : index
    %c0_0 = arith.constant 0 : index
    %1 = vector.load %arg4[%c0, %c0_0] : memref<2x143xf32, #tpu.memory_space<vmem>>, vector<2x7xf32>
    tpu.vector_store %arg4[%c0, %c0_0], %0 {strides = array<i32>} : memref<2x143xf32, #tpu.memory_space<vmem>>, vector<2x7xf32>,
    %cst_1 = arith.constant 0.000000e+00 : f32
    %2 = vector.broadcast %cst_1 : f32 to vector<2x72xf32>
    %c0_2 = arith.constant 0 : index
    %c71 = arith.constant 71 : index
    %3 = vector.load %arg4[%c0_2, %c71] : memref<2x143xf32, #tpu.memory_space<vmem>>, vector<2x72xf32>
    tpu.vector_store %arg4[%c0_2, %c71], %2 {strides = array<i32>} : memref<2x143xf32, #tpu.memory_space<vmem>>, vector<2x72xf32>,
    %c0_3 = arith.constant 0 : index
    %c0_4 = arith.constant 0 : index
    %4 = vector.load %arg2[%c0_3, %c0_4] : memref<2x64xf32, #tpu.memory_space<vmem>>, vector<2x64xf32>
    %c0_5 = arith.constant 0 : index
    %c7 = arith.constant 7 : index
    %5 = vector.load %arg4[%c0_5, %c7] : memref<2x143xf32, #tpu.memory_space<vmem>>, vector<2x64xf32>
    tpu.vector_store %arg4[%c0_5, %c7], %4 {strides = array<i32>} : memref<2x143xf32, #tpu.memory_space<vmem>>, vector<2x64xf32>,
    %c0_6 = arith.constant 0 : index
    %c0_7 = arith.constant 0 : index
    %6 = vector.load %arg1[%c0_6, %c0_7] : memref<8x16xf32, #tpu.memory_space<vmem>>, vector<8x16xf32>
    %c0_8 = arith.constant 0 : index
    %c0_9 = arith.constant 0 : index
    %7 = vector.load %arg4[%c0_8, %c0_9] : memref<2x143xf32, #tpu.memory_space<vmem>>, vector<1x143xf32>
    %8 = vector.extract_strided_slice %7 {offsets = [0, 0], sizes = [1, 128], strides = [1, 1]} : vector<1x143xf32> to vector<1x128xf32>
    %c0_10 = arith.constant 0 : index
    %c0_11 = arith.constant 0 : index
    %9 = vector.load %arg5[%c0_10, %c0_11] : memref<16x128xf32, #tpu.memory_space<vmem>>, vector<1x128xf32>
    tpu.vector_store %arg5[%c0_10, %c0_11], %8 {strides = array<i32>} : memref<16x128xf32, #tpu.memory_space<vmem>>, vector<1x128xf32>,
    %10 = vector.extract_strided_slice %7 {offsets = [0, 1], sizes = [1, 128], strides = [1, 1]} : vector<1x143xf32> to vector<1x128xf32>
    %c1 = arith.constant 1 : index
    %c0_12 = arith.constant 0 : index
    %11 = vector.load %arg5[%c1, %c0_12] : memref<16x128xf32, #tpu.memory_space<vmem>>, vector<1x128xf32>
    tpu.vector_store %arg5[%c1, %c0_12], %10 {strides = array<i32>} : memref<16x128xf32, #tpu.memory_space<vmem>>, vector<1x128xf32>,
    %12 = vector.extract_strided_slice %7 {offsets = [0, 2], sizes = [1, 128], strides = [1, 1]} : vector<1x143xf32> to vector<1x128xf32>
    %c2 = arith.constant 2 : index
    %c0_13 = arith.constant 0 : index
    %13 = vector.load %arg5[%c2, %c0_13] : memref<16x128xf32, #tpu.memory_space<vmem>>, vector<1x128xf32>
    tpu.vector_store %arg5[%c2, %c0_13], %12 {strides = array<i32>} : memref<16x128xf32, #tpu.memory_space<vmem>>, vector<1x128xf32>,
    %14 = vector.extract_strided_slice %7 {offsets = [0, 3], sizes = [1, 128], strides = [1, 1]} : vector<1x143xf32> to vector<1x128xf32>
    %c3 = arith.constant 3 : index
    %c0_14 = arith.constant 0 : index
    %15 = vector.load %arg5[%c3, %c0_14] : memref<16x128xf32, #tpu.memory_space<vmem>>, vector<1x128xf32>
    tpu.vector_store %arg5[%c3, %c0_14], %14 {strides = array<i32>} : memref<16x128xf32, #tpu.memory_space<vmem>>, vector<1x128xf32>,
    %16 = vector.extract_strided_slice %7 {offsets = [0, 4], sizes = [1, 128], strides = [1, 1]} : vector<1x143xf32> to vector<1x128xf32>
    %c4 = arith.constant 4 : index
    %c0_15 = arith.constant 0 : index
    %17 = vector.load %arg5[%c4, %c0_15] : memref<16x128xf32, #tpu.memory_space<vmem>>, vector<1x128xf32>
    tpu.vector_store %arg5[%c4, %c0_15], %16 {strides = array<i32>} : memref<16x128xf32, #tpu.memory_space<vmem>>, vector<1x128xf32>,
    %18 = vector.extract_strided_slice %7 {offsets = [0, 5], sizes = [1, 128], strides = [1, 1]} : vector<1x143xf32> to vector<1x128xf32>
    %c5 = arith.constant 5 : index
    %c0_16 = arith.constant 0 : index
    %19 = vector.load %arg5[%c5, %c0_16] : memref<16x128xf32, #tpu.memory_space<vmem>>, vector<1x128xf32>
    tpu.vector_store %arg5[%c5, %c0_16], %18 {strides = array<i32>} : memref<16x128xf32, #tpu.memory_space<vmem>>, vector<1x128xf32>,
    %20 = vector.extract_strided_slice %7 {offsets = [0, 6], sizes = [1, 128], strides = [1, 1]} : vector<1x143xf32> to vector<1x128xf32>
    %c6 = arith.constant 6 : index
    %c0_17 = arith.constant 0 : index
    %21 = vector.load %arg5[%c6, %c0_17] : memref<16x128xf32, #tpu.memory_space<vmem>>, vector<1x128xf32>
    tpu.vector_store %arg5[%c6, %c0_17], %20 {strides = array<i32>} : memref<16x128xf32, #tpu.memory_space<vmem>>, vector<1x128xf32>,
    %22 = vector.extract_strided_slice %7 {offsets = [0, 7], sizes = [1, 128], strides = [1, 1]} : vector<1x143xf32> to vector<1x128xf32>
    %c7_18 = arith.constant 7 : index
    %c0_19 = arith.constant 0 : index
    %23 = vector.load %arg5[%c7_18, %c0_19] : memref<16x128xf32, #tpu.memory_space<vmem>>, vector<1x128xf32>
    tpu.vector_store %arg5[%c7_18, %c0_19], %22 {strides = array<i32>} : memref<16x128xf32, #tpu.memory_space<vmem>>, vector<1x128xf32>,
    %24 = vector.extract_strided_slice %7 {offsets = [0, 8], sizes = [1, 128], strides = [1, 1]} : vector<1x143xf32> to vector<1x128xf32>
    %c8 = arith.constant 8 : index
    %c0_20 = arith.constant 0 : index
    %25 = vector.load %arg5[%c8, %c0_20] : memref<16x128xf32, #tpu.memory_space<vmem>>, vector<1x128xf32>
    tpu.vector_store %arg5[%c8, %c0_20], %24 {strides = array<i32>} : memref<16x128xf32, #tpu.memory_space<vmem>>, vector<1x128xf32>,
    %26 = vector.extract_strided_slice %7 {offsets = [0, 9], sizes = [1, 128], strides = [1, 1]} : vector<1x143xf32> to vector<1x128xf32>
    %c9 = arith.constant 9 : index
    %c0_21 = arith.constant 0 : index
    %27 = vector.load %arg5[%c9, %c0_21] : memref<16x128xf32, #tpu.memory_space<vmem>>, vector<1x128xf32>
    tpu.vector_store %arg5[%c9, %c0_21], %26 {strides = array<i32>} : memref<16x128xf32, #tpu.memory_space<vmem>>, vector<1x128xf32>,
    %28 = vector.extract_strided_slice %7 {offsets = [0, 10], sizes = [1, 128], strides = [1, 1]} : vector<1x143xf32> to vector<1x128xf32>
    %c10 = arith.constant 10 : index
    %c0_22 = arith.constant 0 : index
    %29 = vector.load %arg5[%c10, %c0_22] : memref<16x128xf32, #tpu.memory_space<vmem>>, vector<1x128xf32>
    tpu.vector_store %arg5[%c10, %c0_22], %28 {strides = array<i32>} : memref<16x128xf32, #tpu.memory_space<vmem>>, vector<1x128xf32>,
    %30 = vector.extract_strided_slice %7 {offsets = [0, 11], sizes = [1, 128], strides = [1, 1]} : vector<1x143xf32> to vector<1x128xf32>
    %c11 = arith.constant 11 : index
    %c0_23 = arith.constant 0 : index
    %31 = vector.load %arg5[%c11, %c0_23] : memref<16x128xf32, #tpu.memory_space<vmem>>, vector<1x128xf32>
    tpu.vector_store %arg5[%c11, %c0_23], %30 {strides = array<i32>} : memref<16x128xf32, #tpu.memory_space<vmem>>, vector<1x128xf32>,
    %32 = vector.extract_strided_slice %7 {offsets = [0, 12], sizes = [1, 128], strides = [1, 1]} : vector<1x143xf32> to vector<1x128xf32>
    %c12 = arith.constant 12 : index
    %c0_24 = arith.constant 0 : index
    %33 = vector.load %arg5[%c12, %c0_24] : memref<16x128xf32, #tpu.memory_space<vmem>>, vector<1x128xf32>
    tpu.vector_store %arg5[%c12, %c0_24], %32 {strides = array<i32>} : memref<16x128xf32, #tpu.memory_space<vmem>>, vector<1x128xf32>,
    %34 = vector.extract_strided_slice %7 {offsets = [0, 13], sizes = [1, 128], strides = [1, 1]} : vector<1x143xf32> to vector<1x128xf32>
    %c13 = arith.constant 13 : index
    %c0_25 = arith.constant 0 : index
    %35 = vector.load %arg5[%c13, %c0_25] : memref<16x128xf32, #tpu.memory_space<vmem>>, vector<1x128xf32>
    tpu.vector_store %arg5[%c13, %c0_25], %34 {strides = array<i32>} : memref<16x128xf32, #tpu.memory_space<vmem>>, vector<1x128xf32>,
    %36 = vector.extract_strided_slice %7 {offsets = [0, 14], sizes = [1, 128], strides = [1, 1]} : vector<1x143xf32> to vector<1x128xf32>
    %c14 = arith.constant 14 : index
    %c0_26 = arith.constant 0 : index
    %37 = vector.load %arg5[%c14, %c0_26] : memref<16x128xf32, #tpu.memory_space<vmem>>, vector<1x128xf32>
    tpu.vector_store %arg5[%c14, %c0_26], %36 {strides = array<i32>} : memref<16x128xf32, #tpu.memory_space<vmem>>, vector<1x128xf32>,
    %38 = vector.extract_strided_slice %7 {offsets = [0, 15], sizes = [1, 128], strides = [1, 1]} : vector<1x143xf32> to vector<1x128xf32>
    %c15 = arith.constant 15 : index
    %c0_27 = arith.constant 0 : index
    %39 = vector.load %arg5[%c15, %c0_27] : memref<16x128xf32, #tpu.memory_space<vmem>>, vector<1x128xf32>
    tpu.vector_store %arg5[%c15, %c0_27], %38 {strides = array<i32>} : memref<16x128xf32, #tpu.memory_space<vmem>>, vector<1x128xf32>,
    %c0_28 = arith.constant 0 : index
    %c0_29 = arith.constant 0 : index
    %40 = vector.load %arg5[%c0_28, %c0_29] : memref<16x128xf32, #tpu.memory_space<vmem>>, vector<16x128xf32>
    %cst_30 = arith.constant dense<0.000000e+00> : vector<8x128xf32>
    %41 = tpu.matmul %6, %40, %cst_30 {dimension_numbers = #tpu.dot_dimension_numbers<[1], [0], [0], [1], [0, 0, 1, 1], [], []>} : vector<8x16xf32>, vector<16x128xf32>, vector<8x128xf32> -> vector<8x128xf32>
    %c0_31 = arith.constant 0 : index
    %c0_32 = arith.constant 0 : index
    %c0_33 = arith.constant 0 : index
    %42 = vector.load %arg3[%c0_31, %c0_32, %c0_33] : memref<2x8x128xf32, #tpu.memory_space<vmem>>, vector<1x8x128xf32>
    %43 = vector.shape_cast %42 : vector<1x8x128xf32> to vector<8x128xf32>
    %44 = vector.shape_cast %41 : vector<8x128xf32> to vector<1x8x128xf32>
    tpu.vector_store %arg3[%c0_31, %c0_32, %c0_33], %44 {strides = array<i32>} : memref<2x8x128xf32, #tpu.memory_space<vmem>>, vector<1x8x128xf32>,
    %c1_34 = arith.constant 1 : index
    %c0_35 = arith.constant 0 : index
    %45 = vector.load %arg4[%c1_34, %c0_35] : memref<2x143xf32, #tpu.memory_space<vmem>>, vector<1x143xf32>
    %46 = vector.extract_strided_slice %45 {offsets = [0, 0], sizes = [1, 128], strides = [1, 1]} : vector<1x143xf32> to vector<1x128xf32>
    %c0_36 = arith.constant 0 : index
    %c0_37 = arith.constant 0 : index
    %47 = vector.load %arg5[%c0_36, %c0_37] : memref<16x128xf32, #tpu.memory_space<vmem>>, vector<1x128xf32>
    tpu.vector_store %arg5[%c0_36, %c0_37], %46 {strides = array<i32>} : memref<16x128xf32, #tpu.memory_space<vmem>>, vector<1x128xf32>,
    %48 = vector.extract_strided_slice %45 {offsets = [0, 1], sizes = [1, 128], strides = [1, 1]} : vector<1x143xf32> to vector<1x128xf32>
    %c1_38 = arith.constant 1 : index
    %c0_39 = arith.constant 0 : index
    %49 = vector.load %arg5[%c1_38, %c0_39] : memref<16x128xf32, #tpu.memory_space<vmem>>, vector<1x128xf32>
    tpu.vector_store %arg5[%c1_38, %c0_39], %48 {strides = array<i32>} : memref<16x128xf32, #tpu.memory_space<vmem>>, vector<1x128xf32>,
    %50 = vector.extract_strided_slice %45 {offsets = [0, 2], sizes = [1, 128], strides = [1, 1]} : vector<1x143xf32> to vector<1x128xf32>
    %c2_40 = arith.constant 2 : index
    %c0_41 = arith.constant 0 : index
    %51 = vector.load %arg5[%c2_40, %c0_41] : memref<16x128xf32, #tpu.memory_space<vmem>>, vector<1x128xf32>
    tpu.vector_store %arg5[%c2_40, %c0_41], %50 {strides = array<i32>} : memref<16x128xf32, #tpu.memory_space<vmem>>, vector<1x128xf32>,
    %52 = vector.extract_strided_slice %45 {offsets = [0, 3], sizes = [1, 128], strides = [1, 1]} : vector<1x143xf32> to vector<1x128xf32>
    %c3_42 = arith.constant 3 : index
    %c0_43 = arith.constant 0 : index
    %53 = vector.load %arg5[%c3_42, %c0_43] : memref<16x128xf32, #tpu.memory_space<vmem>>, vector<1x128xf32>
    tpu.vector_store %arg5[%c3_42, %c0_43], %52 {strides = array<i32>} : memref<16x128xf32, #tpu.memory_space<vmem>>, vector<1x128xf32>,
    %54 = vector.extract_strided_slice %45 {offsets = [0, 4], sizes = [1, 128], strides = [1, 1]} : vector<1x143xf32> to vector<1x128xf32>
    %c4_44 = arith.constant 4 : index
    %c0_45 = arith.constant 0 : index
    %55 = vector.load %arg5[%c4_44, %c0_45] : memref<16x128xf32, #tpu.memory_space<vmem>>, vector<1x128xf32>
    tpu.vector_store %arg5[%c4_44, %c0_45], %54 {strides = array<i32>} : memref<16x128xf32, #tpu.memory_space<vmem>>, vector<1x128xf32>,
    %56 = vector.extract_strided_slice %45 {offsets = [0, 5], sizes = [1, 128], strides = [1, 1]} : vector<1x143xf32> to vector<1x128xf32>
    %c5_46 = arith.constant 5 : index
    %c0_47 = arith.constant 0 : index
    %57 = vector.load %arg5[%c5_46, %c0_47] : memref<16x128xf32, #tpu.memory_space<vmem>>, vector<1x128xf32>
    tpu.vector_store %arg5[%c5_46, %c0_47], %56 {strides = array<i32>} : memref<16x128xf32, #tpu.memory_space<vmem>>, vector<1x128xf32>,
    %58 = vector.extract_strided_slice %45 {offsets = [0, 6], sizes = [1, 128], strides = [1, 1]} : vector<1x143xf32> to vector<1x128xf32>
    %c6_48 = arith.constant 6 : index
    %c0_49 = arith.constant 0 : index
    %59 = vector.load %arg5[%c6_48, %c0_49] : memref<16x128xf32, #tpu.memory_space<vmem>>, vector<1x128xf32>
    tpu.vector_store %arg5[%c6_48, %c0_49], %58 {strides = array<i32>} : memref<16x128xf32, #tpu.memory_space<vmem>>, vector<1x128xf32>,
    %60 = vector.extract_strided_slice %45 {offsets = [0, 7], sizes = [1, 128], strides = [1, 1]} : vector<1x143xf32> to vector<1x128xf32>
    %c7_50 = arith.constant 7 : index
    %c0_51 = arith.constant 0 : index
    %61 = vector.load %arg5[%c7_50, %c0_51] : memref<16x128xf32, #tpu.memory_space<vmem>>, vector<1x128xf32>
    tpu.vector_store %arg5[%c7_50, %c0_51], %60 {strides = array<i32>} : memref<16x128xf32, #tpu.memory_space<vmem>>, vector<1x128xf32>,
    %62 = vector.extract_strided_slice %45 {offsets = [0, 8], sizes = [1, 128], strides = [1, 1]} : vector<1x143xf32> to vector<1x128xf32>
    %c8_52 = arith.constant 8 : index
    %c0_53 = arith.constant 0 : index
    %63 = vector.load %arg5[%c8_52, %c0_53] : memref<16x128xf32, #tpu.memory_space<vmem>>, vector<1x128xf32>
    tpu.vector_store %arg5[%c8_52, %c0_53], %62 {strides = array<i32>} : memref<16x128xf32, #tpu.memory_space<vmem>>, vector<1x128xf32>,
    %64 = vector.extract_strided_slice %45 {offsets = [0, 9], sizes = [1, 128], strides = [1, 1]} : vector<1x143xf32> to vector<1x128xf32>
    %c9_54 = arith.constant 9 : index
    %c0_55 = arith.constant 0 : index
    %65 = vector.load %arg5[%c9_54, %c0_55] : memref<16x128xf32, #tpu.memory_space<vmem>>, vector<1x128xf32>
    tpu.vector_store %arg5[%c9_54, %c0_55], %64 {strides = array<i32>} : memref<16x128xf32, #tpu.memory_space<vmem>>, vector<1x128xf32>,
    %66 = vector.extract_strided_slice %45 {offsets = [0, 10], sizes = [1, 128], strides = [1, 1]} : vector<1x143xf32> to vector<1x128xf32>
    %c10_56 = arith.constant 10 : index
    %c0_57 = arith.constant 0 : index
    %67 = vector.load %arg5[%c10_56, %c0_57] : memref<16x128xf32, #tpu.memory_space<vmem>>, vector<1x128xf32>
    tpu.vector_store %arg5[%c10_56, %c0_57], %66 {strides = array<i32>} : memref<16x128xf32, #tpu.memory_space<vmem>>, vector<1x128xf32>,
    %68 = vector.extract_strided_slice %45 {offsets = [0, 11], sizes = [1, 128], strides = [1, 1]} : vector<1x143xf32> to vector<1x128xf32>
    %c11_58 = arith.constant 11 : index
    %c0_59 = arith.constant 0 : index
    %69 = vector.load %arg5[%c11_58, %c0_59] : memref<16x128xf32, #tpu.memory_space<vmem>>, vector<1x128xf32>
    tpu.vector_store %arg5[%c11_58, %c0_59], %68 {strides = array<i32>} : memref<16x128xf32, #tpu.memory_space<vmem>>, vector<1x128xf32>,
    %70 = vector.extract_strided_slice %45 {offsets = [0, 12], sizes = [1, 128], strides = [1, 1]} : vector<1x143xf32> to vector<1x128xf32>
    %c12_60 = arith.constant 12 : index
    %c0_61 = arith.constant 0 : index
    %71 = vector.load %arg5[%c12_60, %c0_61] : memref<16x128xf32, #tpu.memory_space<vmem>>, vector<1x128xf32>
    tpu.vector_store %arg5[%c12_60, %c0_61], %70 {strides = array<i32>} : memref<16x128xf32, #tpu.memory_space<vmem>>, vector<1x128xf32>,
    %72 = vector.extract_strided_slice %45 {offsets = [0, 13], sizes = [1, 128], strides = [1, 1]} : vector<1x143xf32> to vector<1x128xf32>
    %c13_62 = arith.constant 13 : index
    %c0_63 = arith.constant 0 : index
    %73 = vector.load %arg5[%c13_62, %c0_63] : memref<16x128xf32, #tpu.memory_space<vmem>>, vector<1x128xf32>
    tpu.vector_store %arg5[%c13_62, %c0_63], %72 {strides = array<i32>} : memref<16x128xf32, #tpu.memory_space<vmem>>, vector<1x128xf32>,
    %74 = vector.extract_strided_slice %45 {offsets = [0, 14], sizes = [1, 128], strides = [1, 1]} : vector<1x143xf32> to vector<1x128xf32>
    %c14_64 = arith.constant 14 : index
    %c0_65 = arith.constant 0 : index
    %75 = vector.load %arg5[%c14_64, %c0_65] : memref<16x128xf32, #tpu.memory_space<vmem>>, vector<1x128xf32>
    tpu.vector_store %arg5[%c14_64, %c0_65], %74 {strides = array<i32>} : memref<16x128xf32, #tpu.memory_space<vmem>>, vector<1x128xf32>,
    %76 = vector.extract_strided_slice %45 {offsets = [0, 15], sizes = [1, 128], strides = [1, 1]} : vector<1x143xf32> to vector<1x128xf32>
    %c15_66 = arith.constant 15 : index
    %c0_67 = arith.constant 0 : index
    %77 = vector.load %arg5[%c15_66, %c0_67] : memref<16x128xf32, #tpu.memory_space<vmem>>, vector<1x128xf32>
    tpu.vector_store %arg5[%c15_66, %c0_67], %76 {strides = array<i32>} : memref<16x128xf32, #tpu.memory_space<vmem>>, vector<1x128xf32>,
    %c0_68 = arith.constant 0 : index
    %c0_69 = arith.constant 0 : index
    %78 = vector.load %arg5[%c0_68, %c0_69] : memref<16x128xf32, #tpu.memory_space<vmem>>, vector<16x128xf32>
    %cst_70 = arith.constant dense<0.000000e+00> : vector<8x128xf32>
    %79 = tpu.matmul %6, %78, %cst_70 {dimension_numbers = #tpu.dot_dimension_numbers<[1], [0], [0], [1], [0, 0, 1, 1], [], []>} : vector<8x16xf32>, vector<16x128xf32>, vector<8x128xf32> -> vector<8x128xf32>
    %c1_71 = arith.constant 1 : index
    %c0_72 = arith.constant 0 : index
    %c0_73 = arith.constant 0 : index
    %80 = vector.load %arg3[%c1_71, %c0_72, %c0_73] : memref<2x8x128xf32, #tpu.memory_space<vmem>>, vector<1x8x128xf32>
    %81 = vector.shape_cast %80 : vector<1x8x128xf32> to vector<8x128xf32>
    %82 = vector.shape_cast %79 : vector<8x128xf32> to vector<1x8x128xf32>
    tpu.vector_store %arg3[%c1_71, %c0_72, %c0_73], %82 {strides = array<i32>} : memref<2x8x128xf32, #tpu.memory_space<vmem>>, vector<1x8x128xf32>,
    return
  }
  func.func @transform_0(%arg0: i32) -> (i32, i32) {
    %c0_i32 = arith.constant 0 : i32
    %c0_i32_0 = arith.constant 0 : i32
    %c0_i32_1 = arith.constant 0 : i32
    return %c0_i32, %c0_i32_0 : i32, i32
  }
  func.func @transform_1(%arg0: i32) -> (i32, i32) {
    %c0_i32 = arith.constant 0 : i32
    %c0_i32_0 = arith.constant 0 : i32
    return %arg0, %c0_i32 : i32, i32
  }
  func.func @transform_2(%arg0: i32) -> (i32, i32, i32) {
    %c0_i32 = arith.constant 0 : i32
    %c0_i32_0 = arith.constant 0 : i32
    %c0_i32_1 = arith.constant 0 : i32
    return %arg0, %c0_i32, %c0_i32_0 : i32, i32, i32
  }
}

</mosaic_0001>

<llo_original>
// kernel: tpu_custom_call.1
$region0: #{tpu_custom_call.1}
  #allocation0 [shape = 'u32[]', space=smem, size = 0x4, offset = 0x4, fixed_abs, tag = 'smem constant byte address 0x4 - core index']
  #allocation1 [shape = 'u32[144,128]{1,0:T(1,128)}', space=vmem, size = 0x12000, scoped, tag = 'internal scratch']
  #allocation2 [shape = 'f32[2,143]{1,0:T(2,128)}', space=vmem, size = 0x800, scoped, tag = 'scratch operand']
  #allocation3 [shape = 'f32[16,128]{1,0:T(8,128)}', space=vmem, size = 0x2000, scoped, tag = 'scratch operand']
  %s0 = inlined_call_operand.hbm [shape: f32[8,16], index: 0, kind: input, shape index: {}]
  %s1 = inlined_call_operand.vmem [shape: f32[2,64], index: 1, kind: input, shape index: {}]
  %s2 = inlined_call_operand.hbm [shape: f32[2,8,128], index: 2, kind: output, shape index: {}]
  %s3 = sld [smem:[#allocation0]]
  $region22: #{tpu_custom_call.1} parent=0
    _
  %s5 = ssub.s32 1, %s3
  %s6 = scalar_select 0, %s5, %s3
  $region1: #{tpu_custom_call.1} parent=0
    #allocation4 [shape = 'u8[4096]{0}', space=vmem, size = 0x1000, scoped, tag = 'input window, operand 0, single buffered']
    #allocation5 [shape = 's32[1]{0}', space=sflag, size = 0x4, scoped, tag = 'scoped memory for tpu_custom_call.1']
    #allocation6 [shape = 's32[1]{0}', space=sflag, size = 0x4, scoped, tag = 'scoped memory for tpu_custom_call.1']
    #allocation7 [shape = 'u8[8192]{0}', space=vmem, size = 0x2000, scoped, tag = 'output window, operand 0, single buffered']
    %7 = vsyncpa [#allocation5], 0
    %8 = vsyncpa [#allocation6], 0
    // Predicated region
    $region2: #{tpu_custom_call.1} parent=1 // pred_check
      _
    $region3: #{tpu_custom_call.1} parent=1 // pred_check_branch
      %10 = sbr.rel (0) target = $region5
    $region4: #{tpu_custom_call.1} parent=1 // pred_region
      %s12 = ssub.s32 128, 128
      %13 = vsyncadd [#allocation5], %s12
      %s15 = sshll.u32 [#allocation4], 4
      %s16 = int_to_ptr.vmem [resolvable:$true] %s15
      %18 = dma.hbm_to_vmem [thread:$0]  %s0, 128, %s16, [#allocation5]
    $region5: #{tpu_custom_call.1} parent=1 // pred_fallthru
      _
    // Predicated region
    $region6: #{tpu_custom_call.1} parent=1 // pred_check
      _
    $region7: #{tpu_custom_call.1} parent=1 // pred_check_branch
      %20 = sbr.rel (0) target = $region9
    $region8: #{tpu_custom_call.1} parent=1 // pred_region
      _
    $region9: #{tpu_custom_call.1} parent=1 // pred_fallthru
      _
    // Predicated region
    $region10: #{tpu_custom_call.1} parent=1 // pred_check
      _
    $region11: #{tpu_custom_call.1} parent=1 // pred_check_branch
      %22 = sbr.rel (0) target = $region13
    $region12: #{tpu_custom_call.1} parent=1 // pred_region
      %23 = dma.done [#allocation5], 128
    $region13: #{tpu_custom_call.1} parent=1 // pred_fallthru
      _
    %vm24 = vcmask 50176
    %25 = vst.msk [vmem:[#allocation2] sm:$0x3] %vm24, 0.0
    %vm26 = vcmask 1041976
    %vm27 = vcmask 117762
    %vm28 = vmor %vm27, %vm26
    %29 = vst.msk [vmem:[#allocation2] sm:$0xf] %vm28, 0.0
    %v30 = vld [vmem:[%s1] sm:$0x3]
    %v33 = vunpack.c.l.s4 1983009808
    %v34 = vunpack.c.0.s8 %v33
    %v35 = vlaneseq
    %v36 = vshrl.u32 %v35, 7
    %v37 = vsub.s32 %v34, %v36
    %v38 = vrot.slane %v30, %v37
    %39 = vrot.lane.b32.xlu0 %v38, 7
    %v40 = vpop.permute.xlu0 %39
    %vm42 = vcmask 574520
    %43 = vst.msk [vmem:[#allocation2] sm:$0x3] %vm42, %v40
    %v44 = vld [vmem:[#allocation4] sm:$0xff]
    %v45 = vld [vmem:[#allocation2] ss:$2 sm:$0x3]
    %46 = vst [vmem:[#allocation3] sm:$0x1] %v45
    %v48 = vlaneseq
    %v49 = vshrl.u32 %v48, 7
    %v50 = vsub.s32 0, %v49
    %v51 = vrot.slane %v45, %v50
    %v52 = vlaneseq
    %v53 = vshrl.u32 %v52, 7
    %v54 = vsub.s32 1, %v53
    %v55 = vrot.slane %v45, %v54
    %56 = vrot.lane.b32.xlu0 %v51, 127
    %v57 = vpop.permute.xlu0 %56
    %58 = vrot.lane.b32.xlu0 %v55, 127
    %v59 = vpop.permute.xlu0 %58
    %vm60 = vcmask 1039360
    %v61 = vsel %vm60, %v57, %v59
    %63 = vst [vmem:[#allocation3 + $0x1] sm:$0x1] %v61
    %64 = vrot.lane.b32.xlu0 %v51, 126
    %v65 = vpop.permute.xlu0 %64
    %66 = vrot.lane.b32.xlu0 %v55, 126
    %v67 = vpop.permute.xlu0 %66
    %vm68 = vcmask 1031168
    %v69 = vsel %vm68, %v65, %v67
    %71 = vst [vmem:[#allocation3 + $0x2] sm:$0x1] %v69
    %72 = vrot.lane.b32.xlu0 %v51, 125
    %v73 = vpop.permute.xlu0 %72
    %74 = vrot.lane.b32.xlu0 %v55, 125
    %v75 = vpop.permute.xlu0 %74
    %vm76 = vcmask 1022976
    %v77 = vsel %vm76, %v73, %v75
    %79 = vst [vmem:[#allocation3 + $0x3] sm:$0x1] %v77
    %80 = vrot.lane.b32.xlu0 %v51, 124
    %v81 = vpop.permute.xlu0 %80
    %82 = vrot.lane.b32.xlu0 %v55, 124
    %v83 = vpop.permute.xlu0 %82
    %vm84 = vcmask 1014784
    %v85 = vsel %vm84, %v81, %v83
    %87 = vst [vmem:[#allocation3 + $0x4] sm:$0x1] %v85
    %88 = vrot.lane.b32.xlu0 %v51, 123
    %v89 = vpop.permute.xlu0 %88
    %90 = vrot.lane.b32.xlu0 %v55, 123
    %v91 = vpop.permute.xlu0 %90
    %vm92 = vcmask 1006592
    %v93 = vsel %vm92, %v89, %v91
    %95 = vst [vmem:[#allocation3 + $0x5] sm:$0x1] %v93
    %96 = vrot.lane.b32.xlu0 %v51, 122
    %v97 = vpop.permute.xlu0 %96
    %98 = vrot.lane.b32.xlu0 %v55, 122
    %v99 = vpop.permute.xlu0 %98
    %vm100 = vcmask 998400
    %v101 = vsel %vm100, %v97, %v99
    %103 = vst [vmem:[#allocation3 + $0x6] sm:$0x1] %v101
    %104 = vrot.lane.b32.xlu0 %v51, 121
    %v105 = vpop.permute.xlu0 %104
    %106 = vrot.lane.b32.xlu0 %v55, 121
    %v107 = vpop.permute.xlu0 %106
    %vm108 = vcmask 990208
    %v109 = vsel %vm108, %v105, %v107
    %111 = vst [vmem:[#allocation3 + $0x7] sm:$0x1] %v109
    %112 = vrot.lane.b32.xlu0 %v51, 120
    %v113 = vpop.permute.xlu0 %112
    %114 = vrot.lane.b32.xlu0 %v55, 120
    %v115 = vpop.permute.xlu0 %114
    %vm116 = vcmask 982016
    %v117 = vsel %vm116, %v113, %v115
    %119 = vst [vmem:[#allocation3 + $0x8] sm:$0x1] %v117
    %120 = vrot.lane.b32.xlu0 %v51, 119
    %v121 = vpop.permute.xlu0 %120
    %122 = vrot.lane.b32.xlu0 %v55, 119
    %v123 = vpop.permute.xlu0 %122
    %vm124 = vcmask 973824
    %v125 = vsel %vm124, %v121, %v123
    %127 = vst [vmem:[#allocation3 + $0x9] sm:$0x1] %v125
    %128 = vrot.lane.b32.xlu0 %v51, 118
    %v129 = vpop.permute.xlu0 %128
    %130 = vrot.lane.b32.xlu0 %v55, 118
    %v131 = vpop.permute.xlu0 %130
    %vm132 = vcmask 965632
    %v133 = vsel %vm132, %v129, %v131
    %135 = vst [vmem:[#allocation3 + $0xa] sm:$0x1] %v133
    %136 = vrot.lane.b32.xlu0 %v51, 117
    %v137 = vpop.permute.xlu0 %136
    %138 = vrot.lane.b32.xlu0 %v55, 117
    %v139 = vpop.permute.xlu0 %138
    %vm140 = vcmask 957440
    %v141 = vsel %vm140, %v137, %v139
    %143 = vst [vmem:[#allocation3 + $0xb] sm:$0x1] %v141
    %144 = vrot.lane.b32.xlu0 %v51, 116
    %v145 = vpop.permute.xlu0 %144
    %146 = vrot.lane.b32.xlu0 %v55, 116
    %v147 = vpop.permute.xlu0 %146
    %vm148 = vcmask 949248
    %v149 = vsel %vm148, %v145, %v147
    %151 = vst [vmem:[#allocation3 + $0xc] sm:$0x1] %v149
    %152 = vrot.lane.b32.xlu0 %v51, 115
    %v153 = vpop.permute.xlu0 %152
    %154 = vrot.lane.b32.xlu0 %v55, 115
    %v155 = vpop.permute.xlu0 %154
    %vm156 = vcmask 941056
    %v157 = vsel %vm156, %v153, %v155
    %159 = vst [vmem:[#allocation3 + $0xd] sm:$0x1] %v157
    %160 = vrot.lane.b32.xlu0 %v51, 114
    %v161 = vpop.permute.xlu0 %160
    %162 = vrot.lane.b32.xlu0 %v55, 114
    %v163 = vpop.permute.xlu0 %162
    %vm164 = vcmask 932864
    %v165 = vsel %vm164, %v161, %v163
    %167 = vst [vmem:[#allocation3 + $0xe] sm:$0x1] %v165
    %168 = vrot.lane.b32.xlu0 %v51, 113
    %v169 = vpop.permute.xlu0 %168
    %170 = vrot.lane.b32.xlu0 %v55, 113
    %v171 = vpop.permute.xlu0 %170
    %vm172 = vcmask 924672
    %v173 = vsel %vm172, %v169, %v171
    %175 = vst [vmem:[#allocation3 + $0xf] sm:$0x1] %v173
    %v176 = vld [vmem:[#allocation3] sm:$0xff]
    %v177 = vld [vmem:[#allocation3 + $0x8] sm:$0xff]
    %vm178 = vcmask 130048
    %v180 = vsel %vm178, %v44, 0
    %182 = vmatprep.subr.mxu0 0.0
    %183 = vmatpush1.msra.mxu0 %v176
    %184 = vmatprep.subr.mxu0 0.0
    %185 = vmatpush1.msra.mxu0 %v177
    %186 = vmatprep.subr.mxu0 0.0
    %187 = vmatpush1.msra.mxu0 0.0
    %188 = vmatprep.subr.mxu0 0.0
    %189 = vmatpush1.msra.mxu0 0.0
    %190 = vmatprep.subr.mxu0 0.0
    %191 = vmatpush1.msra.mxu0 0.0
    %192 = vmatprep.subr.mxu0 0.0
    %193 = vmatpush1.msra.mxu0 0.0
    %194 = vmatprep.subr.mxu0 0.0
    %195 = vmatpush1.msra.mxu0 0.0
    %196 = vmatprep.subr.mxu0 0.0
    %197 = vmatpush1.msra.mxu0 0.0
    %198 = vmatprep.subr.mxu0 0.0
    %199 = vmatpush1.msra.mxu0 0.0
    %200 = vmatprep.subr.mxu0 0.0
    %201 = vmatpush1.msra.mxu0 0.0
    %202 = vmatprep.subr.mxu0 0.0
    %203 = vmatpush1.msra.mxu0 0.0
    %204 = vmatprep.subr.mxu0 0.0
    %205 = vmatpush1.msra.mxu0 0.0
    %206 = vmatprep.subr.mxu0 0.0
    %207 = vmatpush1.msra.mxu0 0.0
    %208 = vmatprep.subr.mxu0 0.0
    %209 = vmatpush1.msra.mxu0 0.0
    %210 = vmatprep.subr.mxu0 0.0
    %211 = vmatpush1.msra.mxu0 0.0
    %212 = vmatprep.subr.mxu0 0.0
    %213 = vmatpush1.msra.mxu0 0.0
    %214 = vmatprep.subr.mxu0 0.0
    %215 = vmatpush1.msra.mxu0 0.0
    %216 = vmatprep.subr.mxu0 0.0
    %217 = vmatpush1.msra.mxu0 0.0
    %218 = vmatprep.subr.mxu0 0.0
    %219 = vmatpush1.msra.mxu0 0.0
    %220 = vmatprep.subr.mxu0 0.0
    %221 = vmatpush1.msra.mxu0 0.0
    %222 = vmatprep.subr.mxu0 0.0
    %223 = vmatpush1.msra.mxu0 0.0
    %224 = vmatprep.subr.mxu0 0.0
    %225 = vmatpush1.msra.mxu0 0.0
    %226 = vmatprep.subr.mxu0 0.0
    %227 = vmatpush1.msra.mxu0 0.0
    %228 = vmatprep.subr.mxu0 0.0
    %229 = vmatpush1.msra.mxu0 0.0
    %230 = vmatprep.subr.mxu0 0.0
    %231 = vmatpush1.msra.mxu0 0.0
    %232 = vmatprep.subr.mxu0 0.0
    %233 = vmatpush1.msra.mxu0 0.0
    %234 = vmatprep.subr.mxu0 0.0
    %235 = vmatpush1.msra.mxu0 0.0
    %236 = vmatprep.subr.mxu0 0.0
    %237 = vmatpush1.msra.mxu0 0.0
    %238 = vmatprep.subr.mxu0 0.0
    %239 = vmatpush1.msra.mxu0 0.0
    %240 = vmatprep.subr.mxu0 0.0
    %241 = vmatpush1.msra.mxu0 0.0
    %242 = vmatprep.subr.mxu0 0.0
    %243 = vmatpush1.msra.mxu0 0.0
    %244 = vmatprep.subr.mxu0 0.0
    %245 = vmatpush1.msra.mxu0 0.0
    %246 = vmatprep.mubr.f32.mxu0 0.0
    %247 = vmatmul.mubr.f32.gmra.mrb[0].mxu0 %v180
    %v248 = vpop.f32.mrb[0].mxu0
    %v249 = vadd.f32 0.0, %v248
    %v250 = vpop.f32.mrb[0].mxu0
    %251 = vdwg.mxu0
    %252 = vst [vmem:[#allocation7] sm:$0xff] %v249
    %s253 = scalar_lea.vmem [#allocation2], 1
    %v254 = vld [vmem:[%s253] ss:$2 sm:$0x3]
    %255 = vst [vmem:[#allocation3] sm:$0x1] %v254
    %v257 = vlaneseq
    %v258 = vshrl.u32 %v257, 7
    %v259 = vsub.s32 0, %v258
    %v260 = vrot.slane %v254, %v259
    %v261 = vlaneseq
    %v262 = vshrl.u32 %v261, 7
    %v263 = vsub.s32 1, %v262
    %v264 = vrot.slane %v254, %v263
    %265 = vrot.lane.b32.xlu0 %v260, 127
    %v266 = vpop.permute.xlu0 %265
    %267 = vrot.lane.b32.xlu0 %v264, 127
    %v268 = vpop.permute.xlu0 %267
    %v269 = vsel %vm60, %v266, %v268
    %271 = vst [vmem:[#allocation3 + $0x1] sm:$0x1] %v269
    %272 = vrot.lane.b32.xlu0 %v260, 126
    %v273 = vpop.permute.xlu0 %272
    %274 = vrot.lane.b32.xlu0 %v264, 126
    %v275 = vpop.permute.xlu0 %274
    %v276 = vsel %vm68, %v273, %v275
    %278 = vst [vmem:[#allocation3 + $0x2] sm:$0x1] %v276
    %279 = vrot.lane.b32.xlu0 %v260, 125
    %v280 = vpop.permute.xlu0 %279
    %281 = vrot.lane.b32.xlu0 %v264, 125
    %v282 = vpop.permute.xlu0 %281
    %v283 = vsel %vm76, %v280, %v282
    %285 = vst [vmem:[#allocation3 + $0x3] sm:$0x1] %v283
    %286 = vrot.lane.b32.xlu0 %v260, 124
    %v287 = vpop.permute.xlu0 %286
    %288 = vrot.lane.b32.xlu0 %v264, 124
    %v289 = vpop.permute.xlu0 %288
    %v290 = vsel %vm84, %v287, %v289
    %292 = vst [vmem:[#allocation3 + $0x4] sm:$0x1] %v290
    %293 = vrot.lane.b32.xlu0 %v260, 123
    %v294 = vpop.permute.xlu0 %293
    %295 = vrot.lane.b32.xlu0 %v264, 123
    %v296 = vpop.permute.xlu0 %295
    %v297 = vsel %vm92, %v294, %v296
    %299 = vst [vmem:[#allocation3 + $0x5] sm:$0x1] %v297
    %300 = vrot.lane.b32.xlu0 %v260, 122
    %v301 = vpop.permute.xlu0 %300
    %302 = vrot.lane.b32.xlu0 %v264, 122
    %v303 = vpop.permute.xlu0 %302
    %v304 = vsel %vm100, %v301, %v303
    %306 = vst [vmem:[#allocation3 + $0x6] sm:$0x1] %v304
    %307 = vrot.lane.b32.xlu0 %v260, 121
    %v308 = vpop.permute.xlu0 %307
    %309 = vrot.lane.b32.xlu0 %v264, 121
    %v310 = vpop.permute.xlu0 %309
    %v311 = vsel %vm108, %v308, %v310
    %313 = vst [vmem:[#allocation3 + $0x7] sm:$0x1] %v311
    %314 = vrot.lane.b32.xlu0 %v260, 120
    %v315 = vpop.permute.xlu0 %314
    %316 = vrot.lane.b32.xlu0 %v264, 120
    %v317 = vpop.permute.xlu0 %316
    %v318 = vsel %vm116, %v315, %v317
    %320 = vst [vmem:[#allocation3 + $0x8] sm:$0x1] %v318
    %321 = vrot.lane.b32.xlu0 %v260, 119
    %v322 = vpop.permute.xlu0 %321
    %323 = vrot.lane.b32.xlu0 %v264, 119
    %v324 = vpop.permute.xlu0 %323
    %v325 = vsel %vm124, %v322, %v324
    %327 = vst [vmem:[#allocation3 + $0x9] sm:$0x1] %v325
    %328 = vrot.lane.b32.xlu0 %v260, 118
    %v329 = vpop.permute.xlu0 %328
    %330 = vrot.lane.b32.xlu0 %v264, 118
    %v331 = vpop.permute.xlu0 %330
    %v332 = vsel %vm132, %v329, %v331
    %334 = vst [vmem:[#allocation3 + $0xa] sm:$0x1] %v332
    %335 = vrot.lane.b32.xlu0 %v260, 117
    %v336 = vpop.permute.xlu0 %335
    %337 = vrot.lane.b32.xlu0 %v264, 117
    %v338 = vpop.permute.xlu0 %337
    %v339 = vsel %vm140, %v336, %v338
    %341 = vst [vmem:[#allocation3 + $0xb] sm:$0x1] %v339
    %342 = vrot.lane.b32.xlu0 %v260, 116
    %v343 = vpop.permute.xlu0 %342
    %344 = vrot.lane.b32.xlu0 %v264, 116
    %v345 = vpop.permute.xlu0 %344
    %v346 = vsel %vm148, %v343, %v345
    %348 = vst [vmem:[#allocation3 + $0xc] sm:$0x1] %v346
    %349 = vrot.lane.b32.xlu0 %v260, 115
    %v350 = vpop.permute.xlu0 %349
    %351 = vrot.lane.b32.xlu0 %v264, 115
    %v352 = vpop.permute.xlu0 %351
    %v353 = vsel %vm156, %v350, %v352
    %355 = vst [vmem:[#allocation3 + $0xd] sm:$0x1] %v353
    %356 = vrot.lane.b32.xlu0 %v260, 114
    %v357 = vpop.permute.xlu0 %356
    %358 = vrot.lane.b32.xlu0 %v264, 114
    %v359 = vpop.permute.xlu0 %358
    %v360 = vsel %vm164, %v357, %v359
    %362 = vst [vmem:[#allocation3 + $0xe] sm:$0x1] %v360
    %363 = vrot.lane.b32.xlu0 %v260, 113
    %v364 = vpop.permute.xlu0 %363
    %365 = vrot.lane.b32.xlu0 %v264, 113
    %v366 = vpop.permute.xlu0 %365
    %v367 = vsel %vm172, %v364, %v366
    %369 = vst [vmem:[#allocation3 + $0xf] sm:$0x1] %v367
    %v370 = vld [vmem:[#allocation3] sm:$0xff]
    %v371 = vld [vmem:[#allocation3 + $0x8] sm:$0xff]
    %372 = vmatprep.subr.mxu0 0.0
    %373 = vmatpush1.msra.mxu0 %v370
    %374 = vmatprep.subr.mxu0 0.0
    %375 = vmatpush1.msra.mxu0 %v371
    %376 = vmatprep.subr.mxu0 0.0
    %377 = vmatpush1.msra.mxu0 0.0
    %378 = vmatprep.subr.mxu0 0.0
    %379 = vmatpush1.msra.mxu0 0.0
    %380 = vmatprep.subr.mxu0 0.0
    %381 = vmatpush1.msra.mxu0 0.0
    %382 = vmatprep.subr.mxu0 0.0
    %383 = vmatpush1.msra.mxu0 0.0
    %384 = vmatprep.subr.mxu0 0.0
    %385 = vmatpush1.msra.mxu0 0.0
    %386 = vmatprep.subr.mxu0 0.0
    %387 = vmatpush1.msra.mxu0 0.0
    %388 = vmatprep.subr.mxu0 0.0
    %389 = vmatpush1.msra.mxu0 0.0
    %390 = vmatprep.subr.mxu0 0.0
    %391 = vmatpush1.msra.mxu0 0.0
    %392 = vmatprep.subr.mxu0 0.0
    %393 = vmatpush1.msra.mxu0 0.0
    %394 = vmatprep.subr.mxu0 0.0
    %395 = vmatpush1.msra.mxu0 0.0
    %396 = vmatprep.subr.mxu0 0.0
    %397 = vmatpush1.msra.mxu0 0.0
    %398 = vmatprep.subr.mxu0 0.0
    %399 = vmatpush1.msra.mxu0 0.0
    %400 = vmatprep.subr.mxu0 0.0
    %401 = vmatpush1.msra.mxu0 0.0
    %402 = vmatprep.subr.mxu0 0.0
    %403 = vmatpush1.msra.mxu0 0.0
    %404 = vmatprep.subr.mxu0 0.0
    %405 = vmatpush1.msra.mxu0 0.0
    %406 = vmatprep.subr.mxu0 0.0
    %407 = vmatpush1.msra.mxu0 0.0
    %408 = vmatprep.subr.mxu0 0.0
    %409 = vmatpush1.msra.mxu0 0.0
    %410 = vmatprep.subr.mxu0 0.0
    %411 = vmatpush1.msra.mxu0 0.0
    %412 = vmatprep.subr.mxu0 0.0
    %413 = vmatpush1.msra.mxu0 0.0
    %414 = vmatprep.subr.mxu0 0.0
    %415 = vmatpush1.msra.mxu0 0.0
    %416 = vmatprep.subr.mxu0 0.0
    %417 = vmatpush1.msra.mxu0 0.0
    %418 = vmatprep.subr.mxu0 0.0
    %419 = vmatpush1.msra.mxu0 0.0
    %420 = vmatprep.subr.mxu0 0.0
    %421 = vmatpush1.msra.mxu0 0.0
    %422 = vmatprep.subr.mxu0 0.0
    %423 = vmatpush1.msra.mxu0 0.0
    %424 = vmatprep.subr.mxu0 0.0
    %425 = vmatpush1.msra.mxu0 0.0
    %426 = vmatprep.subr.mxu0 0.0
    %427 = vmatpush1.msra.mxu0 0.0
    %428 = vmatprep.subr.mxu0 0.0
    %429 = vmatpush1.msra.mxu0 0.0
    %430 = vmatprep.subr.mxu0 0.0
    %431 = vmatpush1.msra.mxu0 0.0
    %432 = vmatprep.subr.mxu0 0.0
    %433 = vmatpush1.msra.mxu0 0.0
    %434 = vmatprep.subr.mxu0 0.0
    %435 = vmatpush1.msra.mxu0 0.0
    %436 = vmatprep.mubr.f32.mxu0 0.0
    %437 = vmatmul.mubr.f32.gmra.mrb[0].mxu0 %v180
    %v438 = vpop.f32.mrb[0].mxu0
    %v439 = vadd.f32 0.0, %v438
    %v440 = vpop.f32.mrb[0].mxu0
    %441 = vdwg.mxu0
    %s442 = scalar_lea.vmem [#allocation7], 8
    %443 = vst [vmem:[%s442] sm:$0xff] %v439
    // Predicated region
    $region14: #{tpu_custom_call.1} parent=1 // pred_check
      _
    $region15: #{tpu_custom_call.1} parent=1 // pred_check_branch
      %445 = sbr.rel (0) target = $region17
    $region16: #{tpu_custom_call.1} parent=1 // pred_region
      %s447 = ssub.s32 256, 256
      %448 = vsyncadd [#allocation6], %s447
      %s449 = sshll.u32 [#allocation7], 4
      %s450 = int_to_ptr.vmem [resolvable:$true] %s449
      %455 = dma.vmem_to_hbm [thread:$0]  %s450, 256, %s2, [#allocation6], 128, 128, 8
    $region17: #{tpu_custom_call.1} parent=1 // pred_fallthru
      _
    // Predicated region
    $region18: #{tpu_custom_call.1} parent=1 // pred_check
      _
    $region19: #{tpu_custom_call.1} parent=1 // pred_check_branch
      %457 = sbr.rel (0) target = $region21
    $region20: #{tpu_custom_call.1} parent=1 // pred_region
      %458 = dma.done [#allocation6], 256
    $region21: #{tpu_custom_call.1} parent=1 // pred_fallthru
      _
    %459 = vsyncpa [#allocation5], 1
    %460 = vsyncpa [#allocation6], 1

</llo_original>
